<compile_context>
chip_gen: v7x
topology: tpu7x:2x2x1
jax: 0.10.0
libtpu: 0.0.40
codegen_flags: <defaults>
</compile_context>

<pallas_src>
import functools

import jax
import jax.numpy as jnp
from jax.experimental import pallas as pl
from jax.experimental.pallas import tpu as pltpu

_MIN_NORM = 1e-15
_ATANH_EPS = 1e-5

# Double-buffered-input VMEM budget used to pick the batch tile (bytes).
_VMEM_INPUT_BUDGET = 24 * 1024 * 1024
_MAX_BLOCK_ROWS = 2048


def _hyp_dist_kernel(x1_ref, x2_ref, o_ref, *, c: float):
    u = x1_ref[...].astype(jnp.float32)
    v = x2_ref[...].astype(jnp.float32)

    # Row-wise reductions over the feature (lane) axis. mobius_add(-x1, x2, c):
    #   |x|^2 = |x1|^2 (sign-invariant), |y|^2 = |x2|^2, <x, y> = -<x1, x2>.
    x_sq = jnp.sum(u * u, axis=-1, keepdims=True)
    y_sq = jnp.sum(v * v, axis=-1, keepdims=True)
    xy = -jnp.sum(u * v, axis=-1, keepdims=True)

    a = 1.0 + 2.0 * c * xy + c * y_sq
    b = 1.0 - c * x_sq
    denom = jnp.maximum(1.0 + 2.0 * c * xy + (c * c) * x_sq * y_sq, _MIN_NORM)

    # ||a*x + b*y||^2 computed from the three dot products only (no (TB, D) temporaries).
    num_sq = a * a * x_sq + 2.0 * a * b * xy + b * b * y_sq
    num_sq = jnp.maximum(num_sq, 0.0)  # guard tiny fp-negative before sqrt
    norm = jnp.sqrt(num_sq) / denom

    sqrt_c = c ** 0.5
    t = jnp.clip(sqrt_c * norm, -1.0 + _ATANH_EPS, 1.0 - _ATANH_EPS)
    # artanh(t) = 0.5 * (log1p(t) - log1p(-t))
    dist_c = 0.5 * (jnp.log1p(t) - jnp.log1p(-t))

    o_ref[...] = (dist_c * (2.0 / sqrt_c)).astype(o_ref.dtype)


def _choose_block_rows(batch: int, dim: int, itemsize: int) -> int:
    # 2 inputs x 2 pipeline buffers per block.
    tb = _VMEM_INPUT_BUDGET // max(1, 4 * dim * itemsize)
    tb = min(tb, _MAX_BLOCK_ROWS)
    tb = (tb // 8) * 8
    if tb <= 0:
        tb = 8
    if tb >= batch:
        # Single block covering the full batch (full-dim blocks bypass the (8,128) rule).
        return batch
    return tb


def hyperbolic_distance(x1: jax.Array, x2: jax.Array, curvature: float,
                        block_rows: int | None = None) -> jax.Array:
    """Row-wise Poincaré-ball distance. x1, x2: (B, D) -> (B, 1)."""
    assert x1.shape == x2.shape and x1.ndim == 2
    B, D = x1.shape
    # TODO(synk): curvature is baked in as a static float; a traced/tensor curvature would
    # need an SMEM scalar input instead.
    tb = block_rows if block_rows is not None else _choose_block_rows(B, D, x1.dtype.itemsize)
    tb = min(tb, B)
    grid = (pl.cdiv(B, tb),)

    kernel = functools.partial(_hyp_dist_kernel, c=float(curvature))
    return pl.pallas_call(
        kernel,
        out_shape=jax.ShapeDtypeStruct((B, 1), x1.dtype),
        grid=grid,
        in_specs=[
            pl.BlockSpec((tb, D), lambda i: (i, 0)),
            pl.BlockSpec((tb, D), lambda i: (i, 0)),
        ],
        out_specs=pl.BlockSpec((tb, 1), lambda i: (i, 0)),
        compiler_params=pltpu.CompilerParams(
            dimension_semantics=("parallel",),
            vmem_limit_bytes=48 * 1024 * 1024,
        ),
    )(x1, x2)


def _reference(x1, x2, c):
    # Direct transliteration of hyptorch's dist() for validation.
    x = -x1.astype(jnp.float32)
    y = x2.astype(jnp.float32)
    x2s = jnp.sum(x * x, axis=-1, keepdims=True)
    y2s = jnp.sum(y * y, axis=-1, keepdims=True)
    xy = jnp.sum(x * y, axis=-1, keepdims=True)
    num = (1 + 2 * c * xy + c * y2s) * x + (1 - c * x2s) * y
    denom = jnp.maximum(1 + 2 * c * xy + c * c * x2s * y2s, _MIN_NORM)
    ma = num / denom
    norm = jnp.sqrt(jnp.sum(ma * ma, axis=-1, keepdims=True))
    sqrt_c = c ** 0.5
    t = jnp.clip(sqrt_c * norm, -1 + _ATANH_EPS, 1 - _ATANH_EPS)
    return ((0.5 * (jnp.log1p(t) - jnp.log1p(-t))) * 2.0 / sqrt_c).astype(x1.dtype)


def _make_ball_points(key, shape, scale=0.3):
    x = scale * jax.random.normal(key, shape, dtype=jnp.float32)
    return x / (1.0 + jnp.linalg.norm(x, axis=-1, keepdims=True))


if __name__ == "__main__":
    curvature = 1.0
    key = jax.random.PRNGKey(0)
    k1, k2, k3, k4 = jax.random.split(key, 4)

    # Small shape matching the module spec: (batch=8, dim=32), single block.
    B, D = 8, 32
    x1 = _make_ball_points(k1, (B, D))
    x2 = _make_ball_points(k2, (B, D))
    out = jax.block_until_ready(hyperbolic_distance(x1, x2, curvature))
    ref = _reference(x1, x2, curvature)
    assert out.shape == (B, 1), out.shape
    assert jnp.allclose(out, ref, atol=2e-5, rtol=1e-4), (out, ref)

    # Moderate shape forcing the multi-block pipelined path (4 batch tiles).
    B2, D2 = 512, 128
    y1 = _make_ball_points(k3, (B2, D2), scale=0.1)
    y2 = _make_ball_points(k4, (B2, D2), scale=0.1)
    out2 = jax.block_until_ready(hyperbolic_distance(y1, y2, curvature, block_rows=128))
    ref2 = _reference(y1, y2, curvature)
    assert out2.shape == (B2, 1), out2.shape
    assert jnp.allclose(out2, ref2, atol=2e-5, rtol=1e-4)

    print("KERNEL_OK")
</pallas_src>

<mosaic_0001>
module attributes {stable_mosaic.version = 11 : i64} {
  func.func @_hyp_dist_kernel(%arg0: i32, %arg1: memref<8x32xf32, #tpu.memory_space<vmem>>, %arg2: memref<8x32xf32, #tpu.memory_space<vmem>>, %arg3: memref<8x1xf32, #tpu.memory_space<vmem>>) attributes {dimension_semantics = [#tpu.dimension_semantics<parallel>], iteration_bounds = array<i64: 1>, scalar_prefetch = 0 : i64, scratch_operands = 0 : i64, tpu.core_type = #tpu.core_type<tc>, window_params = [{transform_indices = @transform_0, window_bounds = array<i64: 8, 32>}, {transform_indices = @transform_1, window_bounds = array<i64: 8, 32>}, {transform_indices = @transform_2, window_bounds = array<i64: 8, 1>}]} {
    %c0 = arith.constant 0 : index
    %c0_0 = arith.constant 0 : index
    %0 = vector.load %arg1[%c0, %c0_0] : memref<8x32xf32, #tpu.memory_space<vmem>>, vector<8x32xf32>
    %c0_1 = arith.constant 0 : index
    %c0_2 = arith.constant 0 : index
    %1 = vector.load %arg2[%c0_1, %c0_2] : memref<8x32xf32, #tpu.memory_space<vmem>>, vector<8x32xf32>
    %2 = arith.mulf %0, %0 : vector<8x32xf32>
    %cst = arith.constant dense<0.000000e+00> : vector<8xf32>
    %3 = vector.multi_reduction <add>, %2, %cst [1] : vector<8x32xf32> to vector<8xf32>
    %4 = vector.shape_cast %3 : vector<8xf32> to vector<8x1xf32>
    %5 = arith.mulf %1, %1 : vector<8x32xf32>
    %cst_3 = arith.constant dense<0.000000e+00> : vector<8xf32>
    %6 = vector.multi_reduction <add>, %5, %cst_3 [1] : vector<8x32xf32> to vector<8xf32>
    %7 = vector.shape_cast %6 : vector<8xf32> to vector<8x1xf32>
    %8 = arith.mulf %0, %1 : vector<8x32xf32>
    %cst_4 = arith.constant dense<0.000000e+00> : vector<8xf32>
    %9 = vector.multi_reduction <add>, %8, %cst_4 [1] : vector<8x32xf32> to vector<8xf32>
    %10 = vector.shape_cast %9 : vector<8xf32> to vector<8x1xf32>
    %cst_5 = arith.constant 0.000000e+00 : f32
    %11 = vector.broadcast %cst_5 : f32 to vector<8x1xf32>
    %12 = arith.subf %11, %10 : vector<8x1xf32>
    %cst_6 = arith.constant 2.000000e+00 : f32
    %13 = vector.broadcast %cst_6 : f32 to vector<8x1xf32>
    %14 = arith.mulf %13, %12 : vector<8x1xf32>
    %cst_7 = arith.constant 1.000000e+00 : f32
    %15 = vector.broadcast %cst_7 : f32 to vector<8x1xf32>
    %16 = arith.addf %15, %14 : vector<8x1xf32>
    %cst_8 = arith.constant 1.000000e+00 : f32
    %17 = vector.broadcast %cst_8 : f32 to vector<8x1xf32>
    %18 = arith.mulf %17, %7 : vector<8x1xf32>
    %19 = arith.addf %16, %18 : vector<8x1xf32>
    %cst_9 = arith.constant 1.000000e+00 : f32
    %20 = vector.broadcast %cst_9 : f32 to vector<8x1xf32>
    %21 = arith.mulf %20, %4 : vector<8x1xf32>
    %cst_10 = arith.constant 1.000000e+00 : f32
    %22 = vector.broadcast %cst_10 : f32 to vector<8x1xf32>
    %23 = arith.subf %22, %21 : vector<8x1xf32>
    %cst_11 = arith.constant 2.000000e+00 : f32
    %24 = vector.broadcast %cst_11 : f32 to vector<8x1xf32>
    %25 = arith.mulf %24, %12 : vector<8x1xf32>
    %cst_12 = arith.constant 1.000000e+00 : f32
    %26 = vector.broadcast %cst_12 : f32 to vector<8x1xf32>
    %27 = arith.addf %26, %25 : vector<8x1xf32>
    %cst_13 = arith.constant 1.000000e+00 : f32
    %28 = vector.broadcast %cst_13 : f32 to vector<8x1xf32>
    %29 = arith.mulf %28, %4 : vector<8x1xf32>
    %30 = arith.mulf %29, %7 : vector<8x1xf32>
    %31 = arith.addf %27, %30 : vector<8x1xf32>
    %cst_14 = arith.constant 1.000000e-15 : f32
    %32 = vector.broadcast %cst_14 : f32 to vector<8x1xf32>
    %33 = arith.maximumf %31, %32 : vector<8x1xf32>
    %34 = arith.mulf %19, %19 : vector<8x1xf32>
    %35 = arith.mulf %34, %4 : vector<8x1xf32>
    %cst_15 = arith.constant 2.000000e+00 : f32
    %36 = vector.broadcast %cst_15 : f32 to vector<8x1xf32>
    %37 = arith.mulf %36, %19 : vector<8x1xf32>
    %38 = arith.mulf %37, %23 : vector<8x1xf32>
    %39 = arith.mulf %38, %12 : vector<8x1xf32>
    %40 = arith.addf %35, %39 : vector<8x1xf32>
    %41 = arith.mulf %23, %23 : vector<8x1xf32>
    %42 = arith.mulf %41, %7 : vector<8x1xf32>
    %43 = arith.addf %40, %42 : vector<8x1xf32>
    %cst_16 = arith.constant 0.000000e+00 : f32
    %44 = vector.broadcast %cst_16 : f32 to vector<8x1xf32>
    %45 = arith.maximumf %43, %44 : vector<8x1xf32>
    %46 = math.sqrt %45 : vector<8x1xf32>
    %47 = arith.divf %46, %33 : vector<8x1xf32>
    %cst_17 = arith.constant 1.000000e+00 : f32
    %48 = vector.broadcast %cst_17 : f32 to vector<8x1xf32>
    %49 = arith.mulf %48, %47 : vector<8x1xf32>
    %cst_18 = arith.constant -0.999989986 : f32
    %cst_19 = arith.constant 0.999989986 : f32
    %50 = vector.broadcast %cst_18 : f32 to vector<8x1xf32>
    %51 = arith.maximumf %50, %49 : vector<8x1xf32>
    %52 = vector.broadcast %cst_19 : f32 to vector<8x1xf32>
    %53 = arith.minimumf %52, %51 : vector<8x1xf32>
    %54 = math.log1p %53 : vector<8x1xf32>
    %cst_20 = arith.constant 0.000000e+00 : f32
    %55 = vector.broadcast %cst_20 : f32 to vector<8x1xf32>
    %56 = arith.subf %55, %53 : vector<8x1xf32>
    %57 = math.log1p %56 : vector<8x1xf32>
    %58 = arith.subf %54, %57 : vector<8x1xf32>
    %cst_21 = arith.constant 5.000000e-01 : f32
    %59 = vector.broadcast %cst_21 : f32 to vector<8x1xf32>
    %60 = arith.mulf %59, %58 : vector<8x1xf32>
    %cst_22 = arith.constant 2.000000e+00 : f32
    %61 = vector.broadcast %cst_22 : f32 to vector<8x1xf32>
    %62 = arith.mulf %60, %61 : vector<8x1xf32>
    %c0_23 = arith.constant 0 : index
    %c0_24 = arith.constant 0 : index
    %63 = vector.load %arg3[%c0_23, %c0_24] : memref<8x1xf32, #tpu.memory_space<vmem>>, vector<8x1xf32>
    tpu.vector_store %arg3[%c0_23, %c0_24], %62 {strides = array<i32>} : memref<8x1xf32, #tpu.memory_space<vmem>>, vector<8x1xf32>,
    return
  }
  func.func @transform_0(%arg0: i32) -> (i32, i32) {
    %c0_i32 = arith.constant 0 : i32
    %c0_i32_0 = arith.constant 0 : i32
    return %arg0, %c0_i32 : i32, i32
  }
  func.func @transform_1(%arg0: i32) -> (i32, i32) {
    %c0_i32 = arith.constant 0 : i32
    %c0_i32_0 = arith.constant 0 : i32
    return %arg0, %c0_i32 : i32, i32
  }
  func.func @transform_2(%arg0: i32) -> (i32, i32) {
    %c0_i32 = arith.constant 0 : i32
    %c0_i32_0 = arith.constant 0 : i32
    return %arg0, %c0_i32 : i32, i32
  }
}

</mosaic_0001>

<llo_original>
// kernel: tpu_custom_call.1
$region0: #{tpu_custom_call.1}
  #allocation0 [shape = 'u32[]', space=smem, size = 0x4, offset = 0x4, fixed_abs, tag = 'smem constant byte address 0x4 - core index']
  #allocation1 [shape = 'u32[144,128]{1,0:T(1,128)}', space=vmem, size = 0x12000, scoped, tag = 'internal scratch']
  %s0 = inlined_call_operand.hbm [shape: f32[8,32], index: 0, kind: input, shape index: {}]
  %s1 = inlined_call_operand.hbm [shape: f32[8,32], index: 1, kind: input, shape index: {}]
  %s2 = inlined_call_operand.vmem [shape: f32[8,1], index: 2, kind: output, shape index: {}]
  %s3 = sld [smem:[#allocation0]]
  $region26: #{tpu_custom_call.1} parent=0
    _
  %s5 = ssub.s32 1, %s3
  %s6 = scalar_select 0, %s5, %s3
  $region1: #{tpu_custom_call.1} parent=0
    #allocation2 [shape = 'u8[4096]{0}', space=vmem, size = 0x1000, scoped, tag = 'input window, operand 0, single buffered']
    #allocation3 [shape = 's32[1]{0}', space=sflag, size = 0x4, scoped, tag = 'scoped memory for tpu_custom_call.1']
    #allocation4 [shape = 'u8[4096]{0}', space=vmem, size = 0x1000, scoped, tag = 'input window, operand 1, single buffered']
    #allocation5 [shape = 's32[1]{0}', space=sflag, size = 0x4, scoped, tag = 'scoped memory for tpu_custom_call.1']
    %7 = vsyncpa [#allocation3], 0
    %8 = vsyncpa [#allocation5], 0
    // Predicated region
    $region2: #{tpu_custom_call.1} parent=1 // pred_check
      _
    $region3: #{tpu_custom_call.1} parent=1 // pred_check_branch
      %10 = sbr.rel (0) target = $region5
    $region4: #{tpu_custom_call.1} parent=1 // pred_region
      %s12 = ssub.s32 128, 128
      %13 = vsyncadd [#allocation3], %s12
      %s15 = sshll.u32 [#allocation2], 4
      %s16 = int_to_ptr.vmem [resolvable:$true] %s15
      %18 = dma.hbm_to_vmem [thread:$0]  %s0, 128, %s16, [#allocation3]
    $region5: #{tpu_custom_call.1} parent=1 // pred_fallthru
      _
    // Predicated region
    $region6: #{tpu_custom_call.1} parent=1 // pred_check
      _
    $region7: #{tpu_custom_call.1} parent=1 // pred_check_branch
      %20 = sbr.rel (0) target = $region9
    $region8: #{tpu_custom_call.1} parent=1 // pred_region
      %s22 = ssub.s32 128, 128
      %23 = vsyncadd [#allocation5], %s22
      %s25 = sshll.u32 [#allocation4], 4
      %s26 = int_to_ptr.vmem [resolvable:$true] %s25
      %28 = dma.hbm_to_vmem [thread:$0]  %s1, 128, %s26, [#allocation5]
    $region9: #{tpu_custom_call.1} parent=1 // pred_fallthru
      _
    // Predicated region
    $region10: #{tpu_custom_call.1} parent=1 // pred_check
      _
    $region11: #{tpu_custom_call.1} parent=1 // pred_check_branch
      %30 = sbr.rel (0) target = $region13
    $region12: #{tpu_custom_call.1} parent=1 // pred_region
      %31 = dma.done [#allocation3], 128
    $region13: #{tpu_custom_call.1} parent=1 // pred_fallthru
      _
    // Predicated region
    $region14: #{tpu_custom_call.1} parent=1 // pred_check
      _
    $region15: #{tpu_custom_call.1} parent=1 // pred_check_branch
      %33 = sbr.rel (0) target = $region17
    $region16: #{tpu_custom_call.1} parent=1 // pred_region
      %34 = dma.done [#allocation5], 128
    $region17: #{tpu_custom_call.1} parent=1 // pred_fallthru
      _
    %v35 = vld [vmem:[#allocation2] sm:$0xff]
    %v36 = vld [vmem:[#allocation4] sm:$0xff]
    %v37 = vmul.f32 %v35, %v35
    %vm38 = vcmask 261120
    %v39 = vsel %vm38, %v37, 0.0
    %40 = vadd.xlane.f32.xlu0 %v39
    %v41 = vpop.xlane.xlu0 %40
    %v42 = vmul.f32 %v36, %v36
    %v43 = vsel %vm38, %v42, 0.0
    %44 = vadd.xlane.f32.xlu0 %v43
    %v45 = vpop.xlane.xlu0 %44
    %v46 = vmul.f32 %v35, %v36
    %v47 = vsel %vm38, %v46, 0.0
    %48 = vadd.xlane.f32.xlu0 %v47
    %v49 = vpop.xlane.xlu0 %48
    %v50 = vsub.f32 0.0, %v49
    %v51 = vmul.f32 %v50, 2.0
    %v52 = vadd.f32 %v51, 1.0
    %v53 = vadd.f32 %v52, %v45
    %v54 = vsub.f32 1.0, %v41
    %v55 = vmul.f32 %v41, %v45
    %v56 = vadd.f32 %v52, %v55
    %v57 = vmax.f32 %v56, 1e-15
    %v58 = vmul.f32 %v53, %v53
    %v59 = vmul.f32 %v58, %v41
    %v60 = vmul.f32 %v53, 2.0
    %v61 = vmul.f32 %v60, %v54
    %v62 = vmul.f32 %v61, %v50
    %v63 = vadd.f32 %v59, %v62
    %v64 = vmul.f32 %v54, %v54
    %v65 = vmul.f32 %v64, %v45
    %v66 = vadd.f32 %v63, %v65
    %v67 = vmax.f32 %v66, 0.0
    %v68 = vrsqrt.pop %v67
    %v69 = vmul.f32 %v67, %v68
    %vm70 = vcmp.eq.f32.partialorder %v67, inf
    %v71 = vsel %vm70, %v67, %v69
    %vm72 = vcmp.eq.f32.partialorder %v67, 0.0
    %v73 = vand.u32 %v67, 2147483648
    %v74 = vsel %vm72, %v73, %v71
    %v75 = vrcp.pop %v57
    %v76 = vmul.f32 %v74, %v75
    %v77 = vmax.f32 %v76, -0.99999
    %v78 = vmin.f32 %v77, 0.99999
    %v79 = vadd.f32 %v78, 1.0
    %v80 = vlog2.pop %v79
    %v81 = vmul.f32 %v80, 0.6931472
    %v82 = vmul.f32 -0.5, %v78
    %v83 = vadd.f32 %v82, 1.0
    %v84 = vmul.f32 %v83, %v78
    %v85 = vand.u32 2147483647, %v78
    %vm86 = vcmp.lt.f32.partialorder %v85, 0.0004427343
    %v87 = vsel %vm86, %v84, %v81
    %v88 = vsub.f32 0.0, %v78
    %v89 = vadd.f32 %v88, 1.0
    %v90 = vlog2.pop %v89
    %v91 = vmul.f32 %v90, 0.6931472
    %v92 = vmul.f32 -0.5, %v88
    %v93 = vadd.f32 %v92, 1.0
    %v94 = vmul.f32 %v93, %v88
    %v95 = vand.u32 2147483647, %v88
    %vm96 = vcmp.lt.f32.partialorder %v95, 0.0004427343
    %v97 = vsel %vm96, %v94, %v91
    %v98 = vsub.f32 %v87, %v97
    %v99 = vmul.f32 %v98, 0.5
    %v100 = vmul.f32 %v99, 2.0
    %vm101 = vcmask 7168
    %102 = vst.msk [vmem:[%s2] sm:$0xff] %vm101, %v100
    // Predicated region
    $region18: #{tpu_custom_call.1} parent=1 // pred_check
      _
    $region19: #{tpu_custom_call.1} parent=1 // pred_check_branch
      %104 = sbr.rel (0) target = $region21
    $region20: #{tpu_custom_call.1} parent=1 // pred_region
      _
    $region21: #{tpu_custom_call.1} parent=1 // pred_fallthru
      _
    // Predicated region
    $region22: #{tpu_custom_call.1} parent=1 // pred_check
      _
    $region23: #{tpu_custom_call.1} parent=1 // pred_check_branch
      %106 = sbr.rel (0) target = $region25
    $region24: #{tpu_custom_call.1} parent=1 // pred_region
      _
    $region25: #{tpu_custom_call.1} parent=1 // pred_fallthru
      _
    %107 = vsyncpa [#allocation3], 1
    %108 = vsyncpa [#allocation5], 1

</llo_original>
